<compile_context>
chip_gen: v6e
topology: v6e:2x2x1
jax: 0.10.0
libtpu: 0.0.40
codegen_flags: <defaults>
</compile_context>

<pallas_src>
import jax
import jax.numpy as jnp
from jax.experimental import pallas as pl
from jax.experimental.pallas import tpu as pltpu

NEG_BIG = -1e30  # finite "-inf" for softmax init / vocab padding (exp -> 0.0)


def _round_up(x, m):
    return (x + m - 1) // m * m


def skipgram_kernel(idx_ref,    # (B,)       int32  SMEM (scalar prefetch)
                    w1t_hbm,    # (V, Ep)    f32    HBM (pl.ANY), gathered rows
                    b1_ref,     # (1, Ep)    f32    VMEM, resident
                    w2t_ref,    # (Ep, TN)   bf16   VMEM, streamed vocab tile
                    b2_ref,     # (1, TN)    f32    VMEM, streamed vocab tile
                    out_ref,    # (B, TN)    f32    VMEM, output vocab tile
                    h_ref,      # (B, Ep)    f32    scratch: hidden, persists
                    m_ref,      # (1, 1)     f32    scratch: running global max
                    s_ref,      # (1, 1)     f32    scratch: running sum(exp)
                    gsem):      # (2,)       DMA semaphores for the gather
    phase = pl.program_id(0)    # 0: online max/sum sweep, 1: normalize+write
    j = pl.program_id(1)        # vocab tile index
    B = h_ref.shape[0]

    # ---- first grid step: init softmax stats + gather the B embedding rows
    @pl.when(jnp.logical_and(phase == 0, j == 0))
    def _gather_and_init():
        m_ref[...] = jnp.full_like(m_ref, NEG_BIG)
        s_ref[...] = jnp.zeros_like(s_ref)

        # h[b, :] = W1.T[idx[b], :]  (one-hot x @ W1.T == row gather)
        def row_copy(b, slot):
            return pltpu.make_async_copy(
                w1t_hbm.at[pl.ds(idx_ref[b], 1), :],
                h_ref.at[pl.ds(b, 1), :],
                gsem.at[slot])

        row_copy(0, 0).start()

        @pl.loop(0, B)
        def _(b):
            slot = b % 2

            @pl.when(b + 1 < B)
            def _():
                row_copy(b + 1, 1 - slot).start()   # prefetch next row

            row_copy(b, slot).wait()

        h_ref[...] = h_ref[...] + b1_ref[...]       # + b1 (f32)

    # ---- both passes: logits for this vocab tile (bf16 MXU, f32 accumulate)
    h_bf = h_ref[...].astype(jnp.bfloat16)
    logits = jnp.dot(h_bf, w2t_ref[...],
                     preferred_element_type=jnp.float32) + b2_ref[...]

    # ---- pass 0: online global max / sum(exp) (softmax over ALL B*V elems)
    @pl.when(phase == 0)
    def _accumulate_stats():
        tile_max = jnp.max(jnp.max(logits, axis=1, keepdims=True),
                           axis=0, keepdims=True)            # (1, 1)
        m_old = m_ref[...]
        m_new = jnp.maximum(m_old, tile_max)
        tile_sum = jnp.sum(jnp.sum(jnp.exp(logits - m_new), axis=1,
                                   keepdims=True),
                           axis=0, keepdims=True)            # (1, 1)
        s_ref[...] = s_ref[...] * jnp.exp(m_old - m_new) + tile_sum
        m_ref[...] = m_new

    # ---- pass 1: normalize and write this vocab tile (exact division)
    @pl.when(phase == 1)
    def _normalize_and_write():
        out_ref[...] = (jnp.exp(logits - m_ref[...]) /
                        s_ref[...]).astype(out_ref.dtype)


def skipgram_forward(context_idx, w1, b1, w2, b2, *, tile_v=256):
    """SkipGram forward for one-hot rows x = one_hot(context_idx, V).

    w1: (E, V), b1: (E,), w2: (V, E), b2: (V,)  -- PyTorch Linear layout.
    Returns softmax((x @ w1.T + b1) @ w2.T + b2, flattened to (1, B*V)).
    """
    E, V = w1.shape
    B = context_idx.shape[0]
    E_pad = _round_up(E, 128)          # lane-dense hidden dim / MXU K
    V_pad = _round_up(V, tile_v)       # lane-dense vocab tiles
    nv = V_pad // tile_v

    # Layout / precision prep (pure glue):
    #   W1.T rows are only gathered (B rows) -> keep f32.
    #   W2.T is the dominant HBM stream      -> bf16 halves its bytes.
    #   Padded hidden cols are zero (exact); padded vocab cols get a -1e30
    #   bias so exp() underflows to 0 and they never affect the global sum.
    w1t = jnp.pad(w1.T.astype(jnp.float32), ((0, 0), (0, E_pad - E)))
    b1r = jnp.pad(b1.astype(jnp.float32), (0, E_pad - E)).reshape(1, E_pad)
    w2t = jnp.pad(w2.T.astype(jnp.bfloat16),
                  ((0, E_pad - E), (0, V_pad - V)))
    b2r = jnp.pad(b2.astype(jnp.float32), (0, V_pad - V),
                  constant_values=NEG_BIG).reshape(1, V_pad)

    grid_spec = pltpu.PrefetchScalarGridSpec(
        num_scalar_prefetch=1,                 # context indices -> SMEM
        grid=(2, nv),                          # (softmax pass, vocab tile)
        in_specs=[
            pl.BlockSpec(memory_space=pl.ANY),                        # W1.T (HBM, gathered)
            pl.BlockSpec((1, E_pad), lambda p, j, idx: (0, 0)),       # b1 (resident)
            pl.BlockSpec((E_pad, tile_v), lambda p, j, idx: (0, j)),  # W2.T tile (streamed)
            pl.BlockSpec((1, tile_v), lambda p, j, idx: (0, j)),      # b2 tile
        ],
        # During pass 0 the output block index is pinned to 0 (j*p == 0), so
        # no stale output block is ever written back to HBM; pass 1 sweeps
        # the vocab tiles and writes lane-dense (B, tile_v) slabs.
        out_specs=pl.BlockSpec((B, tile_v), lambda p, j, idx: (0, j * p)),
        scratch_shapes=[
            pltpu.VMEM((B, E_pad), jnp.float32),   # h (hidden), persists over grid
            pltpu.VMEM((1, 1), jnp.float32),       # running global max
            pltpu.VMEM((1, 1), jnp.float32),       # running global sum(exp)
            pltpu.SemaphoreType.DMA((2,)),         # gather double-buffer sems
        ],
    )

    probs = pl.pallas_call(
        skipgram_kernel,
        out_shape=jax.ShapeDtypeStruct((B, V_pad), jnp.float32),
        grid_spec=grid_spec,
        compiler_params=pltpu.CompilerParams(
            # Both axes sequential: the normalize pass needs the global
            # max/sum accumulated by pass 0 in this core's scratch.
            dimension_semantics=("arbitrary", "arbitrary"),
            # Headroom above the scoped default so tile_v can be grown on
            # v5e/v6e (128 MiB physical); still well inside v7x's 64 MiB.
            vmem_limit_bytes=48 << 20,
        ),
    )(context_idx.astype(jnp.int32), w1t, b1r, w2t, b2r)

    # torch's .view(1, -1): drop vocab padding, flatten batch x vocab.
    return probs[:, :V].reshape(1, B * V)


def skipgram_forward_onehot(x, w1, b1, w2, b2, **kw):
    """API-parity wrapper: accepts the one-hot (B, V) input of the PyTorch
    module; skip-gram inputs are one-hot, so x @ W1.T is exactly a row gather."""
    idx = jnp.argmax(x, axis=1).astype(jnp.int32)
    return skipgram_forward(idx, w1, b1, w2, b2, **kw)


def skipgram_reference(x, w1, b1, w2, b2):
    """Pure-JAX mirror of the PyTorch forward with the kernel's precision:
    exact f32 first layer (one-hot selection), bf16 weights + f32 accumulation
    for the second layer, global softmax over the flattened logits."""
    h = jnp.dot(x, w1.T, precision=jax.lax.Precision.HIGHEST) + b1
    h_bf = h.astype(jnp.bfloat16)
    logits = jnp.dot(h_bf, w2.T.astype(jnp.bfloat16),
                     preferred_element_type=jnp.float32) + b2
    return jax.nn.softmax(logits.reshape(1, -1), axis=1)


if __name__ == "__main__":
    B = 128       # contexts per call: feeds the MXU a full M tile
    VOCAB = 1024  # vocab_size (multiple of the vocab tile for this test)
    EMB = 128     # embedding_size (lane-dense)

    key = jax.random.PRNGKey(0)
    k_idx, k_w1, k_b1, k_w2, k_b2 = jax.random.split(key, 5)

    # PyTorch Linear shapes: (out_features, in_features).
    w1 = jax.random.normal(k_w1, (EMB, VOCAB), dtype=jnp.float32) * 0.1
    b1 = jax.random.normal(k_b1, (EMB,), dtype=jnp.float32) * 0.1
    w2 = jax.random.normal(k_w2, (VOCAB, EMB), dtype=jnp.float32) * 0.1
    b2 = jax.random.normal(k_b2, (VOCAB,), dtype=jnp.float32) * 0.1

    # Skip-gram input: one-hot context rows.
    idx = jax.random.randint(k_idx, (B,), 0, VOCAB, dtype=jnp.int32)
    x = jax.nn.one_hot(idx, VOCAB, dtype=jnp.float32)

    out = skipgram_forward_onehot(x, w1, b1, w2, b2)
    out = jax.block_until_ready(out)

    ref = skipgram_reference(x, w1, b1, w2, b2)
    assert out.shape == (1, B * VOCAB)
    assert jnp.isclose(jnp.sum(out), 1.0, atol=1e-4)
    assert jnp.allclose(out, ref, rtol=1e-3, atol=1e-8)

    print("KERNEL_OK")
</pallas_src>

<mosaic_0001>
module attributes {stable_mosaic.version = 11 : i64} {
  func.func @skipgram_kernel(%arg0: i32, %arg1: i32, %arg2: memref<128xi32, #tpu.memory_space<smem>>, %arg3: memref<1024x128xf32, #tpu.memory_space<any>>, %arg4: memref<1x128xf32, #tpu.memory_space<vmem>>, %arg5: memref<128x256xbf16, #tpu.memory_space<vmem>>, %arg6: memref<1x256xf32, #tpu.memory_space<vmem>>, %arg7: memref<128x256xf32, #tpu.memory_space<vmem>>, %arg8: memref<128x128xf32, #tpu.memory_space<vmem>>, %arg9: memref<1x1xf32, #tpu.memory_space<vmem>>, %arg10: memref<1x1xf32, #tpu.memory_space<vmem>>, %arg11: memref<2x!tpu.dma_semaphore, #tpu.memory_space<semaphore_mem>>) attributes {dimension_semantics = [#tpu.dimension_semantics<arbitrary>, #tpu.dimension_semantics<arbitrary>], iteration_bounds = array<i64: 2, 4>, scalar_prefetch = 1 : i64, scratch_operands = 4 : i64, tpu.core_type = #tpu.core_type<tc>, window_params = [{}, {pipeline_mode = #tpu.pipeline_mode<synchronous>, transform_indices = @transform_1, window_bounds = array<i64: 1, 128>}, {transform_indices = @transform_2, window_bounds = array<i64: 128, 256>}, {transform_indices = @transform_3, window_bounds = array<i64: 1, 256>}, {transform_indices = @transform_4, window_bounds = array<i64: 128, 256>}]} {
    %c0_i32 = arith.constant 0 : i32
    %0 = arith.cmpi eq, %arg0, %c0_i32 : i32
    %c0_i32_0 = arith.constant 0 : i32
    %1 = arith.cmpi eq, %arg1, %c0_i32_0 : i32
    %2 = arith.andi %0, %1 : i1
    %3 = arith.extui %2 : i1 to i32
    %c0_i32_1 = arith.constant 0 : i32
    %4 = arith.cmpi ne, %3, %c0_i32_1 : i32
    scf.if %4 {
      %cst_10 = arith.constant -1.000000e+30 : f32
      %18 = vector.broadcast %cst_10 : f32 to vector<1x1xf32>
      %c0_11 = arith.constant 0 : index
      %c0_12 = arith.constant 0 : index
      %19 = vector.load %arg9[%c0_11, %c0_12] : memref<1x1xf32, #tpu.memory_space<vmem>>, vector<1x1xf32>
      tpu.vector_store %arg9[%c0_11, %c0_12], %18 {strides = array<i32>} : memref<1x1xf32, #tpu.memory_space<vmem>>, vector<1x1xf32>,
      %cst_13 = arith.constant 0.000000e+00 : f32
      %20 = vector.broadcast %cst_13 : f32 to vector<1x1xf32>
      %c0_14 = arith.constant 0 : index
      %c0_15 = arith.constant 0 : index
      %21 = vector.load %arg10[%c0_14, %c0_15] : memref<1x1xf32, #tpu.memory_space<vmem>>, vector<1x1xf32>
      tpu.vector_store %arg10[%c0_14, %c0_15], %20 {strides = array<i32>} : memref<1x1xf32, #tpu.memory_space<vmem>>, vector<1x1xf32>,
      %c0_16 = arith.constant 0 : index
      %22 = memref.load %arg2[%c0_16] : memref<128xi32, #tpu.memory_space<smem>>
      %c0_i32_17 = arith.constant 0 : i32
      %c0_i32_18 = arith.constant 0 : i32
      %23 = tpu.memref_slice %arg3[%22, %c0_i32_18] : memref<1024x128xf32, #tpu.memory_space<any>> -> memref<1x128xf32, #tpu.memory_space<any>>
      %c0_i32_19 = arith.constant 0 : i32
      %c0_i32_20 = arith.constant 0 : i32
      %24 = tpu.memref_slice %arg8[%c0_i32_19, %c0_i32_20] : memref<128x128xf32, #tpu.memory_space<vmem>> -> memref<1x128xf32, #tpu.memory_space<vmem>>
      %25 = tpu.memref_slice %arg11[%c0_i32_17] : memref<2x!tpu.dma_semaphore, #tpu.memory_space<semaphore_mem>> -> memref<1x!tpu.dma_semaphore, #tpu.memory_space<semaphore_mem>>
      %26 = tpu.memref_squeeze %25 : memref<1x!tpu.dma_semaphore, #tpu.memory_space<semaphore_mem>> -> memref<!tpu.dma_semaphore, #tpu.memory_space<semaphore_mem>>
      tpu.enqueue_dma source(%23 : memref<1x128xf32, #tpu.memory_space<any>>) target(%24 : memref<1x128xf32, #tpu.memory_space<vmem>>) target_semaphore(%26 : memref<!tpu.dma_semaphore, #tpu.memory_space<semaphore_mem>>)
      %c0_i32_21 = arith.constant 0 : i32
      %c128_i32 = arith.constant 128 : i32
      %27 = arith.addi %c0_i32_21, %c128_i32 : i32
      %c1_i32_22 = arith.constant 1 : i32
      scf.for %arg12 = %c0_i32_21 to %27 step %c1_i32_22  : i32 {
        %c1_i32_30 = arith.constant 1 : i32
        %33 = arith.muli %arg12, %c1_i32_30 : i32
        %c0_i32_31 = arith.constant 0 : i32
        %34 = arith.addi %c0_i32_31, %33 : i32
        %c2_i32 = arith.constant 2 : i32
        %c0_i32_32 = arith.constant 0 : i32
        %35 = arith.cmpi eq, %c2_i32, %c0_i32_32 : i32
        %c1_i32_33 = arith.constant 1 : i32
        %36 = arith.select %35, %c1_i32_33, %c2_i32 : i32
        %37 = arith.remsi %34, %36 : i32
        %c0_i32_34 = arith.constant 0 : i32
        %38 = arith.cmpi ne, %37, %c0_i32_34 : i32
        %c0_i32_35 = arith.constant 0 : i32
        %39 = arith.cmpi slt, %37, %c0_i32_35 : i32
        %c0_i32_36 = arith.constant 0 : i32
        %40 = arith.cmpi slt, %36, %c0_i32_36 : i32
        %41 = arith.xori %39, %40 : i1
        %42 = arith.andi %41, %38 : i1
        %43 = arith.addi %37, %36 : i32
        %44 = arith.select %42, %43, %37 : i32
        %c1_i32_37 = arith.constant 1 : i32
        %45 = arith.addi %34, %c1_i32_37 : i32
        %c128_i32_38 = arith.constant 128 : i32
        %46 = arith.cmpi slt, %45, %c128_i32_38 : i32
        %47 = arith.extui %46 : i1 to i32
        %c0_i32_39 = arith.constant 0 : i32
        %48 = arith.cmpi ne, %47, %c0_i32_39 : i32
        scf.if %48 {
          %c1_i32_42 = arith.constant 1 : i32
          %55 = arith.addi %34, %c1_i32_42 : i32
          %c1_i32_43 = arith.constant 1 : i32
          %56 = arith.subi %c1_i32_43, %44 : i32
          %57 = arith.index_cast %55 : i32 to index
          %58 = memref.load %arg2[%57] : memref<128xi32, #tpu.memory_space<smem>>
          %c0_i32_44 = arith.constant 0 : i32
          %59 = tpu.memref_slice %arg3[%58, %c0_i32_44] : memref<1024x128xf32, #tpu.memory_space<any>> -> memref<1x128xf32, #tpu.memory_space<any>>
          %c0_i32_45 = arith.constant 0 : i32
          %60 = tpu.memref_slice %arg8[%55, %c0_i32_45] : memref<128x128xf32, #tpu.memory_space<vmem>> -> memref<1x128xf32, #tpu.memory_space<vmem>>
          %61 = tpu.memref_slice %arg11[%56] : memref<2x!tpu.dma_semaphore, #tpu.memory_space<semaphore_mem>> -> memref<1x!tpu.dma_semaphore, #tpu.memory_space<semaphore_mem>>
          %62 = tpu.memref_squeeze %61 : memref<1x!tpu.dma_semaphore, #tpu.memory_space<semaphore_mem>> -> memref<!tpu.dma_semaphore, #tpu.memory_space<semaphore_mem>>
          tpu.enqueue_dma source(%59 : memref<1x128xf32, #tpu.memory_space<any>>) target(%60 : memref<1x128xf32, #tpu.memory_space<vmem>>) target_semaphore(%62 : memref<!tpu.dma_semaphore, #tpu.memory_space<semaphore_mem>>)
        } else {
        }
        %49 = arith.index_cast %34 : i32 to index
        %50 = memref.load %arg2[%49] : memref<128xi32, #tpu.memory_space<smem>>
        %c0_i32_40 = arith.constant 0 : i32
        %51 = tpu.memref_slice %arg3[%50, %c0_i32_40] : memref<1024x128xf32, #tpu.memory_space<any>> -> memref<1x128xf32, #tpu.memory_space<any>>
        %c0_i32_41 = arith.constant 0 : i32
        %52 = tpu.memref_slice %arg8[%34, %c0_i32_41] : memref<128x128xf32, #tpu.memory_space<vmem>> -> memref<1x128xf32, #tpu.memory_space<vmem>>
        %53 = tpu.memref_slice %arg11[%44] : memref<2x!tpu.dma_semaphore, #tpu.memory_space<semaphore_mem>> -> memref<1x!tpu.dma_semaphore, #tpu.memory_space<semaphore_mem>>
        %54 = tpu.memref_squeeze %53 : memref<1x!tpu.dma_semaphore, #tpu.memory_space<semaphore_mem>> -> memref<!tpu.dma_semaphore, #tpu.memory_space<semaphore_mem>>
        tpu.wait_dma2 semaphore(%54 : memref<!tpu.dma_semaphore, #tpu.memory_space<semaphore_mem>>) src(%51 : memref<1x128xf32, #tpu.memory_space<any>>) dst(%52 : memref<1x128xf32, #tpu.memory_space<vmem>>)
      }
      %c128_i32_23 = arith.constant 128 : i32
      %c0_24 = arith.constant 0 : index
      %c0_25 = arith.constant 0 : index
      %28 = vector.load %arg8[%c0_24, %c0_25] : memref<128x128xf32, #tpu.memory_space<vmem>>, vector<128x128xf32>
      %c0_26 = arith.constant 0 : index
      %c0_27 = arith.constant 0 : index
      %29 = vector.load %arg4[%c0_26, %c0_27] : memref<1x128xf32, #tpu.memory_space<vmem>>, vector<1x128xf32>
      %30 = vector.broadcast %29 : vector<1x128xf32> to vector<128x128xf32>
      %31 = arith.addf %28, %30 : vector<128x128xf32>
      %c0_28 = arith.constant 0 : index
      %c0_29 = arith.constant 0 : index
      %32 = vector.load %arg8[%c0_28, %c0_29] : memref<128x128xf32, #tpu.memory_space<vmem>>, vector<128x128xf32>
      tpu.vector_store %arg8[%c0_28, %c0_29], %31 {strides = array<i32>} : memref<128x128xf32, #tpu.memory_space<vmem>>, vector<128x128xf32>,
    } else {
    }
    %c0 = arith.constant 0 : index
    %c0_2 = arith.constant 0 : index
    %5 = vector.load %arg8[%c0, %c0_2] : memref<128x128xf32, #tpu.memory_space<vmem>>, vector<128x128xf32>
    %6 = arith.truncf %5 : vector<128x128xf32> to vector<128x128xbf16>
    %c0_3 = arith.constant 0 : index
    %c0_4 = arith.constant 0 : index
    %7 = vector.load %arg5[%c0_3, %c0_4] : memref<128x256xbf16, #tpu.memory_space<vmem>>, vector<128x256xbf16>
    %cst = arith.constant dense<0.000000e+00> : vector<128x256xf32>
    %8 = tpu.matmul %6, %7, %cst {dimension_numbers = #tpu.dot_dimension_numbers<[1], [0], [0], [1], [0, 0, 1, 1], [], []>} : vector<128x128xbf16>, vector<128x256xbf16>, vector<128x256xf32> -> vector<128x256xf32>
    %c0_5 = arith.constant 0 : index
    %c0_6 = arith.constant 0 : index
    %9 = vector.load %arg6[%c0_5, %c0_6] : memref<1x256xf32, #tpu.memory_space<vmem>>, vector<1x256xf32>
    %10 = vector.broadcast %9 : vector<1x256xf32> to vector<128x256xf32>
    %11 = arith.addf %8, %10 : vector<128x256xf32>
    %c0_i32_7 = arith.constant 0 : i32
    %12 = arith.cmpi eq, %arg0, %c0_i32_7 : i32
    %13 = arith.extui %12 : i1 to i32
    %c0_i32_8 = arith.constant 0 : i32
    %14 = arith.cmpi ne, %13, %c0_i32_8 : i32
    scf.if %14 {
      %cst_10 = arith.constant dense<0xFF800000> : vector<128xf32>
      %18 = vector.multi_reduction <maximumf>, %11, %cst_10 [1] : vector<128x256xf32> to vector<128xf32>
      %19 = vector.shape_cast %18 : vector<128xf32> to vector<128x1xf32>
      %cst_11 = arith.constant dense<0xFF800000> : vector<1xf32>
      %20 = vector.multi_reduction <maximumf>, %19, %cst_11 [0] : vector<128x1xf32> to vector<1xf32>
      %21 = vector.shape_cast %20 : vector<1xf32> to vector<1x1xf32>
      %c0_12 = arith.constant 0 : index
      %c0_13 = arith.constant 0 : index
      %22 = vector.load %arg9[%c0_12, %c0_13] : memref<1x1xf32, #tpu.memory_space<vmem>>, vector<1x1xf32>
      %23 = arith.maximumf %22, %21 : vector<1x1xf32>
      %24 = vector.broadcast %23 : vector<1x1xf32> to vector<128x256xf32>
      %25 = arith.subf %11, %24 : vector<128x256xf32>
      %26 = math.exp %25 : vector<128x256xf32>
      %cst_14 = arith.constant dense<0.000000e+00> : vector<128xf32>
      %27 = vector.multi_reduction <add>, %26, %cst_14 [1] : vector<128x256xf32> to vector<128xf32>
      %28 = vector.shape_cast %27 : vector<128xf32> to vector<128x1xf32>
      %cst_15 = arith.constant dense<0.000000e+00> : vector<1xf32>
      %29 = vector.multi_reduction <add>, %28, %cst_15 [0] : vector<128x1xf32> to vector<1xf32>
      %30 = vector.shape_cast %29 : vector<1xf32> to vector<1x1xf32>
      %c0_16 = arith.constant 0 : index
      %c0_17 = arith.constant 0 : index
      %31 = vector.load %arg10[%c0_16, %c0_17] : memref<1x1xf32, #tpu.memory_space<vmem>>, vector<1x1xf32>
      %32 = arith.subf %22, %23 : vector<1x1xf32>
      %33 = math.exp %32 : vector<1x1xf32>
      %34 = arith.mulf %31, %33 : vector<1x1xf32>
      %35 = arith.addf %34, %30 : vector<1x1xf32>
      %c0_18 = arith.constant 0 : index
      %c0_19 = arith.constant 0 : index
      %36 = vector.load %arg10[%c0_18, %c0_19] : memref<1x1xf32, #tpu.memory_space<vmem>>, vector<1x1xf32>
      tpu.vector_store %arg10[%c0_18, %c0_19], %35 {strides = array<i32>} : memref<1x1xf32, #tpu.memory_space<vmem>>, vector<1x1xf32>,
      %c0_20 = arith.constant 0 : index
      %c0_21 = arith.constant 0 : index
      %37 = vector.load %arg9[%c0_20, %c0_21] : memref<1x1xf32, #tpu.memory_space<vmem>>, vector<1x1xf32>
      tpu.vector_store %arg9[%c0_20, %c0_21], %23 {strides = array<i32>} : memref<1x1xf32, #tpu.memory_space<vmem>>, vector<1x1xf32>,
    } else {
    }
    %c1_i32 = arith.constant 1 : i32
    %15 = arith.cmpi eq, %arg0, %c1_i32 : i32
    %16 = arith.extui %15 : i1 to i32
    %c0_i32_9 = arith.constant 0 : i32
    %17 = arith.cmpi ne, %16, %c0_i32_9 : i32
    scf.if %17 {
      %c0_10 = arith.constant 0 : index
      %c0_11 = arith.constant 0 : index
      %18 = vector.load %arg9[%c0_10, %c0_11] : memref<1x1xf32, #tpu.memory_space<vmem>>, vector<1x1xf32>
      %19 = vector.broadcast %18 : vector<1x1xf32> to vector<128x256xf32>
      %20 = arith.subf %11, %19 : vector<128x256xf32>
      %21 = math.exp %20 : vector<128x256xf32>
      %c0_12 = arith.constant 0 : index
      %c0_13 = arith.constant 0 : index
      %22 = vector.load %arg10[%c0_12, %c0_13] : memref<1x1xf32, #tpu.memory_space<vmem>>, vector<1x1xf32>
      %23 = vector.broadcast %22 : vector<1x1xf32> to vector<128x256xf32>
      %24 = arith.divf %21, %23 : vector<128x256xf32>
      %c0_14 = arith.constant 0 : index
      %c0_15 = arith.constant 0 : index
      %25 = vector.load %arg7[%c0_14, %c0_15] : memref<128x256xf32, #tpu.memory_space<vmem>>, vector<128x256xf32>
      tpu.vector_store %arg7[%c0_14, %c0_15], %24 {strides = array<i32>} : memref<128x256xf32, #tpu.memory_space<vmem>>, vector<128x256xf32>,
    } else {
    }
    return
  }
  func.func @transform_1(%arg0: i32, %arg1: i32, %arg2: memref<128xi32, #tpu.memory_space<smem>>) -> (i32, i32) {
    %c0_i32 = arith.constant 0 : i32
    %c0_i32_0 = arith.constant 0 : i32
    %c0_i32_1 = arith.constant 0 : i32
    return %c0_i32, %c0_i32_0 : i32, i32
  }
  func.func @transform_2(%arg0: i32, %arg1: i32, %arg2: memref<128xi32, #tpu.memory_space<smem>>) -> (i32, i32) {
    %c0_i32 = arith.constant 0 : i32
    %c0_i32_0 = arith.constant 0 : i32
    return %c0_i32, %arg1 : i32, i32
  }
  func.func @transform_3(%arg0: i32, %arg1: i32, %arg2: memref<128xi32, #tpu.memory_space<smem>>) -> (i32, i32) {
    %c0_i32 = arith.constant 0 : i32
    %c0_i32_0 = arith.constant 0 : i32
    return %c0_i32, %arg1 : i32, i32
  }
  func.func @transform_4(%arg0: i32, %arg1: i32, %arg2: memref<128xi32, #tpu.memory_space<smem>>) -> (i32, i32) {
    %0 = arith.muli %arg1, %arg0 : i32
    %c0_i32 = arith.constant 0 : i32
    %c0_i32_0 = arith.constant 0 : i32
    return %c0_i32, %0 : i32, i32
  }
}

</mosaic_0001>

<llo_original>
// kernel: tpu_custom_call.1
$region0: #{tpu_custom_call.1}
  #allocation0 [shape = 'u32[]', space=smem, size = 0x4, offset = 0x4, fixed_abs, tag = 'smem constant byte address 0x4 - core index']
  #allocation1 [shape = 'u32[144,128]{1,0:T(1,128)}', space=vmem, size = 0x12000, scoped, tag = 'internal scratch']
  #allocation2 [shape = 'f32[128,128]{1,0:T(8,128)}', space=vmem, size = 0x10000, scoped, tag = 'scratch operand']
  #allocation3 [shape = 'f32[1,1]{1,0:T(1,128)}', space=vmem, size = 0x200, scoped, tag = 'scratch operand']
  #allocation4 [shape = 'f32[1,1]{1,0:T(1,128)}', space=vmem, size = 0x200, scoped, tag = 'scratch operand']
  #allocation5 [shape = 's32[2]{0}', space=sflag, size = 0x8, scoped, tag = 'scratch operand']
  #allocation6 [shape = 's32[1]{0}', space=sflag, size = 0x4, scoped, tag = 'scoped memory for tpu_custom_call.1']
  #allocation7 [shape = 'u8[512]{0}', space=smem, size = 0x200, scoped, tag = 'prefetched SMEM operand 0']
  #allocation14 [shape = 's32[]', space=sflag, size = 0x4, offset = 0, fixed_abs, tag = 'sflag constant byte address 0x0 - dummy sync flag']
  #allocation15 [shape = 's32[]', space=sflag, size = 0x4, offset = 0, fixed_abs, tag = 'sflag constant byte address 0x0 - dummy sync flag']
  #allocation16 [shape = 'u32[]', space=smem, size = 0x4, offset = 0x44, fixed_abs, tag = 'smem constant byte address 0x44 - assertion arg 0']
  #allocation17 [shape = 'u32[]', space=smem, size = 0x4, offset = 0x48, fixed_abs, tag = 'smem constant byte address 0x48 - assertion arg 1']
  #allocation18 [shape = 's32[]', space=sflag, size = 0x4, offset = 0, fixed_abs, tag = 'sflag constant byte address 0x0 - dummy sync flag']
  #allocation19 [shape = 's32[]', space=sflag, size = 0x4, offset = 0, fixed_abs, tag = 'sflag constant byte address 0x0 - dummy sync flag']
  %s0 = inlined_call_operand.hbm [shape: s32[128], index: 0, kind: input, shape index: {}]
  %s1 = inlined_call_operand.hbm [shape: f32[1024,128], index: 1, kind: input, shape index: {}]
  %s2 = inlined_call_operand.vmem [shape: f32[1,128], index: 2, kind: input, shape index: {}]
  %s3 = inlined_call_operand.hbm [shape: bf16[128,1024], index: 3, kind: input, shape index: {}]
  %s4 = inlined_call_operand.hbm [shape: f32[1,1024], index: 4, kind: input, shape index: {}]
  %s5 = inlined_call_operand.hbm [shape: f32[128,1024], index: 5, kind: output, shape index: {}]
  %s6 = sld [smem:[#allocation0]]
  $region84: #{tpu_custom_call.1} parent=0
    _
  %s8 = ssub.s32 1, %s6
  %s9 = scalar_select 0, %s8, %s6
  %11 = dma.hbm_to_smem %s0, 16, [#allocation7], [#allocation6]
  %12 = dma.done [#allocation6], 16
  %13 = sfence
  $region1: #{tpu_custom_call.1} parent=0
    #allocation8 [shape = 'u8[131072]{0}', space=vmem, size = 0x20000, scoped, tag = 'input window, operand 3']
    #allocation9 [shape = 's32[2]{0}', space=sflag, size = 0x8, scoped, tag = 'scoped memory for tpu_custom_call.1']
    #allocation10 [shape = 's32[2]{0}', space=sflag, size = 0x8, scoped, tag = 'scoped memory for tpu_custom_call.1']
    #allocation11 [shape = 'u8[2048]{0}', space=vmem, size = 0x800, scoped, tag = 'input window, operand 4']
    #allocation12 [shape = 's32[2]{0}', space=sflag, size = 0x8, scoped, tag = 'scoped memory for tpu_custom_call.1']
    #allocation13 [shape = 'u8[262144]{0}', space=vmem, size = 0x40000, scoped, tag = 'output window, operand 0']
    %14 = vsyncpa [#allocation9], 0
    %s15 = scalar_lea.sflag [#allocation9], 1
    %16 = vsyncpa %s15, 0
    %17 = vsyncpa [#allocation12], 0
    %s18 = scalar_lea.sflag [#allocation12], 1
    %19 = vsyncpa %s18, 0
    %20 = vsyncpa [#allocation10], 0
    %s21 = scalar_lea.sflag [#allocation10], 1
    %22 = vsyncpa %s21, 0
    loop: start=0, step=1, limit=10
    $region2: #{tpu_custom_call.1} parent=1 // loop_pre_header
      _
    $region3: #{tpu_custom_call.1} parent=1 // loop_header
      %s24 = sphi 0, %s28
      %p25 = scmp.ge.s32.totalorder %s24, 10
      %s31 = sphi 0, %s43
      %s32 = sphi 0, %s39
      %s33 = sphi 0, %s31
      %s34 = sphi 0, %s32
      %s35 = sphi 0, %s33
      %s36 = sphi 0, %s34
      %s44 = sphi 0, %s44
      %s46 = sphi 0, %s44
      %s47 = sphi 0, %s46
      %s61 = sphi 0, %s47
      %s67 = sphi 0, %s69
      %s70 = sphi 0, %s67
      %s71 = sphi 0, %s70
      %s87 = sphi 0, %s71
      %s93 = sphi 0, %s95
      %s96 = sphi 0, %s93
      %s97 = sphi 0, %s96
      %s113 = sphi 0, %s97
      %s121 = sphi 0, %s123
      %s124 = sphi 0, %s121
      %s125 = sphi 0, %s124
      %s141 = sphi 0, %s125
    $region4: #{tpu_custom_call.1} parent=1 // loop_header_branch
      %27 = sbr.rel (%p25) target = $region8
    $region5: #{tpu_custom_call.1} parent=1 // loop_body
      %s29 = ssub.s32 %s24, 1
      %s30 = ssub.s32 %s24, 2
      %s37 = sadd.s32 1, %s32
      %p38 = scmp.ge.s32.totalorder %s37, 4
      %s39 = scalar_select %p38, 0, %s37
      %s40 = sadd.s32 1, %s31
      %s41 = scalar_select %p38, %s40, %s31
      %p42 = scmp.ge.s32.totalorder %s41, 2
      %s43 = scalar_select %p42, 0, %s41
      %s45 = sadd.s32 %s44, 1
      %p48 = scmp.eq.s32.totalorder %s24, 7
      %p49 = scmp.ne.s32.totalorder %s44, %s46
      %p50 = scmp.eq.s32.totalorder %s24, 0
      %p51 = por %p49, %p50
      %p52 = scmp.ne.s32.totalorder %s44, %s46
      %p53 = scmp.eq.s32.totalorder %s29, 7
      %p54 = por %p52, %p53
      %p55 = scmp.ne.s32.totalorder %s46, %s47
      %p56 = scmp.eq.s32.totalorder %s29, 0
      %p57 = por %p55, %p56
      %p58 = scmp.ne.s32.totalorder %s46, %s47
      %p59 = scmp.eq.s32.totalorder %s30, 7
      %p60 = por %p58, %p59
      %p62 = scmp.ne.s32.totalorder %s47, %s61
      %p63 = scmp.eq.s32.totalorder %s30, 0
      %p64 = por %p62, %p63
      %s65 = ssub.s32 %s32, %s39
      %p66 = scmp.eq.s32.totalorder %s65, 0
      %s68 = sadd.s32 %s67, 1
      %s69 = scalar_select %p66, %s67, %s68
      %p72 = pneg %p66
      %p73 = scmp.eq.s32.totalorder %s24, 7
      %p74 = por %p72, %p73
      %p75 = scmp.ne.s32.totalorder %s67, %s70
      %p76 = scmp.eq.s32.totalorder %s24, 0
      %p77 = por %p75, %p76
      %p78 = scmp.ne.s32.totalorder %s67, %s70
      %p79 = scmp.eq.s32.totalorder %s29, 7
      %p80 = por %p78, %p79
      %p81 = scmp.ne.s32.totalorder %s70, %s71
      %p82 = scmp.eq.s32.totalorder %s29, 0
      %p83 = por %p81, %p82
      %p84 = scmp.ne.s32.totalorder %s70, %s71
      %p85 = scmp.eq.s32.totalorder %s30, 7
      %p86 = por %p84, %p85
      %p88 = scmp.ne.s32.totalorder %s71, %s87
      %p89 = scmp.eq.s32.totalorder %s30, 0
      %p90 = por %p88, %p89
      %s91 = ssub.s32 %s32, %s39
      %p92 = scmp.eq.s32.totalorder %s91, 0
      %s94 = sadd.s32 %s93, 1
      %s95 = scalar_select %p92, %s93, %s94
      %p98 = pneg %p92
      %p99 = scmp.eq.s32.totalorder %s24, 7
      %p100 = por %p98, %p99
      %p101 = scmp.ne.s32.totalorder %s93, %s96
      %p102 = scmp.eq.s32.totalorder %s24, 0
      %p103 = por %p101, %p102
      %p104 = scmp.ne.s32.totalorder %s93, %s96
      %p105 = scmp.eq.s32.totalorder %s29, 7
      %p106 = por %p104, %p105
      %p107 = scmp.ne.s32.totalorder %s96, %s97
      %p108 = scmp.eq.s32.totalorder %s29, 0
      %p109 = por %p107, %p108
      %p110 = scmp.ne.s32.totalorder %s96, %s97
      %p111 = scmp.eq.s32.totalorder %s30, 7
      %p112 = por %p110, %p111
      %p114 = scmp.ne.s32.totalorder %s97, %s113
      %p115 = scmp.eq.s32.totalorder %s30, 0
      %p116 = por %p114, %p115
      %s117 = smul.u32 %s32, %s31
      %s118 = smul.u32 %s39, %s43
      %s119 = ssub.s32 %s117, %s118
      %p120 = scmp.eq.s32.totalorder %s119, 0
      %s122 = sadd.s32 %s121, 1
      %s123 = scalar_select %p120, %s121, %s122
      %p126 = pneg %p120
      %p127 = scmp.eq.s32.totalorder %s24, 7
      %p128 = por %p126, %p127
      %p129 = scmp.ne.s32.totalorder %s121, %s124
      %p130 = scmp.eq.s32.totalorder %s24, 0
      %p131 = por %p129, %p130
      %p132 = scmp.ne.s32.totalorder %s121, %s124
      %p133 = scmp.eq.s32.totalorder %s29, 7
      %p134 = por %p132, %p133
      %p135 = scmp.ne.s32.totalorder %s124, %s125
      %p136 = scmp.eq.s32.totalorder %s29, 0
      %p137 = por %p135, %p136
      %p138 = scmp.ne.s32.totalorder %s124, %s125
      %p139 = scmp.eq.s32.totalorder %s30, 7
      %p140 = por %p138, %p139
      %p142 = scmp.ne.s32.totalorder %s125, %s141
      %p143 = scmp.eq.s32.totalorder %s30, 0
      %p144 = por %p142, %p143
      %p145 = scmp.le.s32.totalorder 1, %s24
      %p146 = scmp.lt.s32.totalorder %s24, 9
      %p147 = pnand %p145, %p146
      %p148 = pneg %p147
      // Predicated region
      $region9: #{tpu_custom_call.1} parent=5 // pred_check
        _
      $region10: #{tpu_custom_call.1} parent=5 // pred_check_branch
        %150 = sbr.rel (%p147) target = $region12
      $region11: #{tpu_custom_call.1} parent=5 // pred_region
        %s151 = ssub.s32 %s24, 1
        // Predicated region
        $region13: #{tpu_custom_call.1} parent=11 // pred_check
          %p152 = pneg %p57
        $region14: #{tpu_custom_call.1} parent=11 // pred_check_branch
          %154 = sbr.rel (%p152) target = $region16
        $region15: #{tpu_custom_call.1} parent=11 // pred_region
          _
        $region16: #{tpu_custom_call.1} parent=11 // pred_fallthru
          _
      $region12: #{tpu_custom_call.1} parent=5 // pred_fallthru
        _
      %p155 = scmp.lt.s32.totalorder %s24, 8
      // Predicated region
      $region17: #{tpu_custom_call.1} parent=5 // pred_check
        %p156 = pneg %p155
      $region18: #{tpu_custom_call.1} parent=5 // pred_check_branch
        %158 = sbr.rel (%p156) target = $region20
      $region19: #{tpu_custom_call.1} parent=5 // pred_region
        // Predicated region
        $region21: #{tpu_custom_call.1} parent=19 // pred_check
          %p159 = pneg %p77
        $region22: #{tpu_custom_call.1} parent=19 // pred_check_branch
          %161 = sbr.rel (%p159) target = $region24
        $region23: #{tpu_custom_call.1} parent=19 // pred_region
          %s162 = sand.u32 %s67, 1
          %s163 = scalar_lea.sflag [#allocation9], %s162
          %s164 = sand.u32 %s67, 1
          %s165 = smul.addr %s164, 128
          %s166 = scalar_lea.vmem [#allocation8], %s165
          %s167 = smul.u32 2, %s32
          %s169 = ssub.s32 2048, 2048
          %170 = vsyncadd %s163, %s169
          %s171 = smul.addr %s167, 64
          %s172 = scalar_lea.hbm %s3, %s171
          %s173 = sshll.u32 %s166, 4
          %s174 = int_to_ptr.vmem [resolvable:$true] %s173
          %179 = dma.hbm_to_vmem [thread:$0]  %s172, 2048, %s174, %s163, 512, 128, 8
        $region24: #{tpu_custom_call.1} parent=19 // pred_fallthru
          _
        // Predicated region
        $region25: #{tpu_custom_call.1} parent=19 // pred_check
          %p180 = pneg %p103
        $region26: #{tpu_custom_call.1} parent=19 // pred_check_branch
          %182 = sbr.rel (%p180) target = $region28
        $region27: #{tpu_custom_call.1} parent=19 // pred_region
          %s183 = sand.u32 %s93, 1
          %s184 = scalar_lea.sflag [#allocation12], %s183
          %s185 = sand.u32 %s93, 1
          %s186 = smul.addr %s185, 2
          %s187 = scalar_lea.vmem [#allocation11], %s186
          %s188 = smul.u32 2, %s32
          %s190 = ssub.s32 32, 32
          %191 = vsyncadd %s184, %s190
          %s192 = smul.addr %s188, 16
          %s193 = scalar_lea.hbm %s4, %s192
          %s195 = sshll.u32 %s187, 4
          %s196 = int_to_ptr.vmem [resolvable:$true] %s195
          %198 = dma.hbm_to_vmem [thread:$0]  %s193, 32, %s196, %s184
        $region28: #{tpu_custom_call.1} parent=19 // pred_fallthru
          _
      $region20: #{tpu_custom_call.1} parent=5 // pred_fallthru
        _
      %p199 = scmp.le.s32.totalorder 1, %s24
      %p200 = scmp.lt.s32.totalorder %s24, 9
      %p201 = pnand %p199, %p200
      %p202 = pneg %p201
      // Predicated region
      $region29: #{tpu_custom_call.1} parent=5 // pred_check
        _
      $region30: #{tpu_custom_call.1} parent=5 // pred_check_branch
        %204 = sbr.rel (%p201) target = $region32
      $region31: #{tpu_custom_call.1} parent=5 // pred_region
        %s205 = ssub.s32 %s24, 1
        %s206 = sand.u32 %s70, 1
        %s207 = scalar_lea.sflag [#allocation9], %s206
        %s208 = sand.u32 %s70, 1
        %s209 = smul.addr %s208, 128
        %s210 = scalar_lea.vmem [#allocation8], %s209
        // Predicated region
        $region33: #{tpu_custom_call.1} parent=31 // pred_check
          %p211 = pneg %p83
        $region34: #{tpu_custom_call.1} parent=31 // pred_check_branch
          %213 = sbr.rel (%p211) target = $region36
        $region35: #{tpu_custom_call.1} parent=31 // pred_region
          %214 = dma.done %s207, 2048
        $region36: #{tpu_custom_call.1} parent=31 // pred_fallthru
          _
        %s215 = sand.u32 %s96, 1
        %s216 = scalar_lea.sflag [#allocation12], %s215
        %s217 = sand.u32 %s96, 1
        %s218 = smul.addr %s217, 2
        %s219 = scalar_lea.vmem [#allocation11], %s218
        // Predicated region
        $region37: #{tpu_custom_call.1} parent=31 // pred_check
          %p220 = pneg %p109
        $region38: #{tpu_custom_call.1} parent=31 // pred_check_branch
          %222 = sbr.rel (%p220) target = $region40
        $region39: #{tpu_custom_call.1} parent=31 // pred_region
          %223 = dma.done %s216, 32
        $region40: #{tpu_custom_call.1} parent=31 // pred_fallthru
          _
        %p224 = pneg %p57
        %p225 = pneg %p54
        %s226 = sand.u32 %s70, 1
        %s227 = scalar_lea.sflag [#allocation9], %s226
        %s228 = sand.u32 %s70, 1
        %s229 = smul.addr %s228, 128
        %s230 = scalar_lea.vmem [#allocation8], %s229
        %p231 = pneg %p83
        %p232 = pneg %p80
        %s233 = sand.u32 %s96, 1
        %s234 = scalar_lea.sflag [#allocation12], %s233
        %s235 = sand.u32 %s96, 1
        %s236 = smul.addr %s235, 2
        %s237 = scalar_lea.vmem [#allocation11], %s236
        %p238 = pneg %p109
        %p239 = pneg %p106
        %p240 = pneg %p137
        %p241 = pneg %p134
        %s242 = sand.u32 %s124, 1
        %s243 = scalar_lea.sflag [#allocation10], %s242
        %s244 = sand.u32 %s124, 1
        %s245 = smul.addr %s244, 256
        %s246 = scalar_lea.vmem [#allocation13], %s245
        %s247 = smul.u32 2, %s34
        %s248 = smul.u32 2, %s34
        %s249 = smul.u32 %s34, %s33
        %s250 = smul.u32 2, %s249
        %p252 = scmp.eq.s32.totalorder %s33, 0
        %p253 = scmp.eq.s32.totalorder %s34, 0
        %p254 = pnand %p252, %p253
        %p255 = pneg %p254
        // Predicated region
        $region41: #{tpu_custom_call.1} parent=31 // pred_check
          _
        $region42: #{tpu_custom_call.1} parent=31 // pred_check_branch
          %257 = sbr.rel (%p254) target = $region44
        $region43: #{tpu_custom_call.1} parent=31 // pred_region
          %vm258 = vcmask 0
          %259 = vst.msk [vmem:[#allocation3] sm:$0x1] %vm258, -1e+30
          %260 = vst.msk [vmem:[#allocation4] sm:$0x1] %vm258, 0.0
          %s261 = sld [smem:[#allocation7]]
          %s262 = smul.addr %s261, 16
          %s263 = scalar_lea.hbm %s1, %s262
          // Predicated region
          $region45: #{tpu_custom_call.1} parent=43 // pred_check
            _
          $region46: #{tpu_custom_call.1} parent=43 // pred_check_branch
            %265 = sbr.rel target = $region48
          $region47: #{tpu_custom_call.1} parent=43 // pred_region
            %266 = sst [smem:[#allocation16]] [#allocation15]
            %267 = sst [smem:[#allocation17]] [#allocation14]
          $region48: #{tpu_custom_call.1} parent=43 // pred_fallthru
            _
          %269 = shalt.err (0)
          %s271 = sshll.u32 [#allocation2], 4
          %s272 = int_to_ptr.vmem [resolvable:$true] %s271
          %274 = dma.hbm_to_vmem [thread:$0]  %s263, 16, %s272, [#allocation5]
          loop: start=0, step=1, limit=128
          $region49: #{tpu_custom_call.1} parent=43 // loop_pre_header
            _
          $region50: #{tpu_custom_call.1} parent=43 // loop_header
            %s276 = sphi 0, %s280
            %p277 = scmp.ge.s32.totalorder %s276, 128
          $region51: #{tpu_custom_call.1} parent=43 // loop_header_branch
            %279 = sbr.rel (%p277) target = $region55
          $region52: #{tpu_custom_call.1} parent=43 // loop_body
            %p281 = scmp.lt.s32.totalorder %s276, 0
            %s282 = ssub.s32 0, %s276
            %s283 = scalar_select %p281, %s282, %s276
            %s284 = sand.u32 %s283, 1
            %s285 = ssub.s32 0, %s284
            %s286 = scalar_select %p281, %s285, %s284
            %p287 = scmp.ne.s32.totalorder %s286, 0
            %p288 = scmp.lt.s32.totalorder %s286, 0
            %p289 = pnand %p288, %p287
            %p290 = pneg %p289
            %s291 = sadd.s32 %s286, 2
            %s292 = scalar_select %p290, %s291, %s286
            %s293 = sadd.s32 %s276, 1
            %p294 = scmp.lt.s32.totalorder %s293, 128
            // Predicated region
            $region56: #{tpu_custom_call.1} parent=52 // pred_check
              %p295 = pneg %p294
            $region57: #{tpu_custom_call.1} parent=52 // pred_check_branch
              %297 = sbr.rel (%p295) target = $region59
            $region58: #{tpu_custom_call.1} parent=52 // pred_region
              %s298 = ssub.s32 1, %s292
              %s299 = sld [smem:[#allocation7 + %s293]]
              %s300 = smul.addr %s299, 16
              %s301 = scalar_lea.hbm %s1, %s300
              %s302 = scalar_lea.vmem [#allocation2], %s293
              %s303 = scalar_lea.sflag [#allocation5], %s298
              // Predicated region
              $region60: #{tpu_custom_call.1} parent=58 // pred_check
                _
              $region61: #{tpu_custom_call.1} parent=58 // pred_check_branch
                %305 = sbr.rel target = $region63
              $region62: #{tpu_custom_call.1} parent=58 // pred_region
                %306 = sst [smem:[#allocation16]] [#allocation19]
                %307 = sst [smem:[#allocation17]] [#allocation18]
              $region63: #{tpu_custom_call.1} parent=58 // pred_fallthru
                _
              %309 = shalt.err (0)
              %s311 = sshll.u32 %s302, 4
              %s312 = int_to_ptr.vmem [resolvable:$true] %s311
              %314 = dma.hbm_to_vmem [thread:$0]  %s301, 16, %s312, %s303
            $region59: #{tpu_custom_call.1} parent=52 // pred_fallthru
              _
            %s315 = sld [smem:[#allocation7 + %s276]]
            %s316 = scalar_lea.sflag [#allocation5], %s292
            %s317 = smul.u32 1, 1
            %s318 = sshll.u32 %s317, 4
            %319 = dma.done %s316, %s318
          $region53: #{tpu_custom_call.1} parent=43 // loop_footer
            %s280 = sadd.s32 1, %s276
          $region54: #{tpu_custom_call.1} parent=43 // loop_footer_branch
            %275 = sbr.rel target = $region50
          $region55: #{tpu_custom_call.1} parent=43 // loop_exit
            _
          %v320 = vld [vmem:[#allocation2] sm:$0xff]
          %v321 = vld [vmem:[#allocation2 + $0x8] sm:$0xff]
          %v322 = vld [vmem:[#allocation2 + $0x10] sm:$0xff]
          %v323 = vld [vmem:[#allocation2 + $0x18] sm:$0xff]
          %v324 = vld [vmem:[#allocation2 + $0x20] sm:$0xff]
          %v325 = vld [vmem:[#allocation2 + $0x28] sm:$0xff]
          %v326 = vld [vmem:[#allocation2 + $0x30] sm:$0xff]
          %v327 = vld [vmem:[#allocation2 + $0x38] sm:$0xff]
          %v328 = vld [vmem:[#allocation2 + $0x40] sm:$0xff]
          %v329 = vld [vmem:[#allocation2 + $0x48] sm:$0xff]
          %v330 = vld [vmem:[#allocation2 + $0x50] sm:$0xff]
          %v331 = vld [vmem:[#allocation2 + $0x58] sm:$0xff]
          %v332 = vld [vmem:[#allocation2 + $0x60] sm:$0xff]
          %v333 = vld [vmem:[#allocation2 + $0x68] sm:$0xff]
          %v334 = vld [vmem:[#allocation2 + $0x70] sm:$0xff]
          %v335 = vld [vmem:[#allocation2 + $0x78] sm:$0xff]
          %v336 = vld [vmem:[%s2] sm:$0x1]
          %v338 = vlaneseq
          %v339 = vshrl.u32 %v338, 7
          %v340 = vsub.s32 0, %v339
          %v341 = vrot.slane %v336, %v340
          %v343 = vadd.f32 %v320, %v341
          %v344 = vadd.f32 %v321, %v341
          %v345 = vadd.f32 %v322, %v341
          %v346 = vadd.f32 %v323, %v341
          %v347 = vadd.f32 %v324, %v341
          %v348 = vadd.f32 %v325, %v341
          %v349 = vadd.f32 %v326, %v341
          %v350 = vadd.f32 %v327, %v341
          %v351 = vadd.f32 %v328, %v341
          %v352 = vadd.f32 %v329, %v341
          %v353 = vadd.f32 %v330, %v341
          %v354 = vadd.f32 %v331, %v341
          %v355 = vadd.f32 %v332, %v341
          %v356 = vadd.f32 %v333, %v341
          %v357 = vadd.f32 %v334, %v341
          %v358 = vadd.f32 %v335, %v341
          %359 = vst [vmem:[#allocation2] sm:$0xff] %v343
          %360 = vst [vmem:[#allocation2 + $0x8] sm:$0xff] %v344
          %361 = vst [vmem:[#allocation2 + $0x10] sm:$0xff] %v345
          %362 = vst [vmem:[#allocation2 + $0x18] sm:$0xff] %v346
          %363 = vst [vmem:[#allocation2 + $0x20] sm:$0xff] %v347
          %364 = vst [vmem:[#allocation2 + $0x28] sm:$0xff] %v348
          %365 = vst [vmem:[#allocation2 + $0x30] sm:$0xff] %v349
          %366 = vst [vmem:[#allocation2 + $0x38] sm:$0xff] %v350
          %367 = vst [vmem:[#allocation2 + $0x40] sm:$0xff] %v351
          %368 = vst [vmem:[#allocation2 + $0x48] sm:$0xff] %v352
          %369 = vst [vmem:[#allocation2 + $0x50] sm:$0xff] %v353
          %370 = vst [vmem:[#allocation2 + $0x58] sm:$0xff] %v354
          %371 = vst [vmem:[#allocation2 + $0x60] sm:$0xff] %v355
          %372 = vst [vmem:[#allocation2 + $0x68] sm:$0xff] %v356
          %373 = vst [vmem:[#allocation2 + $0x70] sm:$0xff] %v357
          %374 = vst [vmem:[#allocation2 + $0x78] sm:$0xff] %v358
        $region44: #{tpu_custom_call.1} parent=31 // pred_fallthru
          _
        %v375 = vld [vmem:[#allocation2] sm:$0xff]
        %v376 = vld [vmem:[#allocation2 + $0x8] sm:$0xff]
        %v377 = vld [vmem:[#allocation2 + $0x10] sm:$0xff]
        %v378 = vld [vmem:[#allocation2 + $0x18] sm:$0xff]
        %v379 = vld [vmem:[#allocation2 + $0x20] sm:$0xff]
        %v380 = vld [vmem:[#allocation2 + $0x28] sm:$0xff]
        %v381 = vld [vmem:[#allocation2 + $0x30] sm:$0xff]
        %v382 = vld [vmem:[#allocation2 + $0x38] sm:$0xff]
        %v383 = vld [vmem:[#allocation2 + $0x40] sm:$0xff]
        %v384 = vld [vmem:[#allocation2 + $0x48] sm:$0xff]
        %v385 = vld [vmem:[#allocation2 + $0x50] sm:$0xff]
        %v386 = vld [vmem:[#allocation2 + $0x58] sm:$0xff]
        %v387 = vld [vmem:[#allocation2 + $0x60] sm:$0xff]
        %v388 = vld [vmem:[#allocation2 + $0x68] sm:$0xff]
        %v389 = vld [vmem:[#allocation2 + $0x70] sm:$0xff]
        %v390 = vld [vmem:[#allocation2 + $0x78] sm:$0xff]
        %v391 = vpack.c.bf16 %v376, %v375
        %v392 = vpack.c.bf16 %v378, %v377
        %v393 = vpack.c.bf16 %v380, %v379
        %v394 = vpack.c.bf16 %v382, %v381
        %v395 = vpack.c.bf16 %v384, %v383
        %v396 = vpack.c.bf16 %v386, %v385
        %v397 = vpack.c.bf16 %v388, %v387
        %v398 = vpack.c.bf16 %v390, %v389
        %v399 = vld [vmem:[%s210] sm:$0xff]
        %v400 = vld [vmem:[%s210 + $0x8] sm:$0xff]
        %v401 = vld [vmem:[%s210 + $0x10] sm:$0xff]
        %v402 = vld [vmem:[%s210 + $0x18] sm:$0xff]
        %v403 = vld [vmem:[%s210 + $0x20] sm:$0xff]
        %v404 = vld [vmem:[%s210 + $0x28] sm:$0xff]
        %v405 = vld [vmem:[%s210 + $0x30] sm:$0xff]
        %v406 = vld [vmem:[%s210 + $0x38] sm:$0xff]
        %v407 = vld [vmem:[%s210 + $0x40] sm:$0xff]
        %v408 = vld [vmem:[%s210 + $0x48] sm:$0xff]
        %v409 = vld [vmem:[%s210 + $0x50] sm:$0xff]
        %v410 = vld [vmem:[%s210 + $0x58] sm:$0xff]
        %v411 = vld [vmem:[%s210 + $0x60] sm:$0xff]
        %v412 = vld [vmem:[%s210 + $0x68] sm:$0xff]
        %v413 = vld [vmem:[%s210 + $0x70] sm:$0xff]
        %v414 = vld [vmem:[%s210 + $0x78] sm:$0xff]
        %v415 = vld [vmem:[%s219] sm:$0x3]
        %v417 = vlaneseq
        %v418 = vshrl.u32 %v417, 7
        %v419 = vsub.s32 0, %v418
        %v420 = vrot.slane %v415, %v419
        %v421 = vlaneseq
        %v422 = vshrl.u32 %v421, 7
        %v423 = vsub.s32 1, %v422
        %v424 = vrot.slane %v415, %v423
        %v443 = vunpack.c.l.b16 %v399
        %v444 = vunpack.c.h.b16 %v399
        %v445 = vunpack.c.l.b16 %v400
        %v446 = vunpack.c.h.b16 %v400
        %v447 = vunpack.c.l.b16 %v401
        %v448 = vunpack.c.h.b16 %v401
        %v449 = vunpack.c.l.b16 %v402
        %v450 = vunpack.c.h.b16 %v402
        %v451 = vunpack.c.l.b16 %v403
        %v452 = vunpack.c.h.b16 %v403
        %v453 = vunpack.c.l.b16 %v404
        %v454 = vunpack.c.h.b16 %v404
        %v455 = vunpack.c.l.b16 %v405
        %v456 = vunpack.c.h.b16 %v405
        %v457 = vunpack.c.l.b16 %v406
        %v458 = vunpack.c.h.b16 %v406
        %v459 = vunpack.c.l.b16 %v407
        %v460 = vunpack.c.h.b16 %v407
        %v461 = vunpack.c.l.b16 %v408
        %v462 = vunpack.c.h.b16 %v408
        %v463 = vunpack.c.l.b16 %v409
        %v464 = vunpack.c.h.b16 %v409
        %v465 = vunpack.c.l.b16 %v410
        %v466 = vunpack.c.h.b16 %v410
        %v467 = vunpack.c.l.b16 %v411
        %v468 = vunpack.c.h.b16 %v411
        %v469 = vunpack.c.l.b16 %v412
        %v470 = vunpack.c.h.b16 %v412
        %v471 = vunpack.c.l.b16 %v413
        %v472 = vunpack.c.h.b16 %v413
        %v473 = vunpack.c.l.b16 %v414
        %v474 = vunpack.c.h.b16 %v414
        %v475 = vpack.c.b16 %v445, %v443
        %v476 = vpack.c.b16 %v446, %v444
        %v477 = vpack.c.b16 %v449, %v447
        %v478 = vpack.c.b16 %v450, %v448
        %v479 = vpack.c.b16 %v453, %v451
        %v480 = vpack.c.b16 %v454, %v452
        %v481 = vpack.c.b16 %v457, %v455
        %v482 = vpack.c.b16 %v458, %v456
        %v483 = vpack.c.b16 %v461, %v459
        %v484 = vpack.c.b16 %v462, %v460
        %v485 = vpack.c.b16 %v465, %v463
        %v486 = vpack.c.b16 %v466, %v464
        %v487 = vpack.c.b16 %v469, %v467
        %v488 = vpack.c.b16 %v470, %v468
        %v489 = vpack.c.b16 %v473, %v471
        %v490 = vpack.c.b16 %v474, %v472
        %507 = vmatprep.subr.bf16.mxu0 %v490
        %508 = vmatpush1.bf16.msra.mxu0 %v489
        %509 = vmatprep.subr.bf16.mxu0 %v488
        %510 = vmatpush1.bf16.msra.mxu0 %v487
        %511 = vmatprep.subr.bf16.mxu0 %v486
        %512 = vmatpush1.bf16.msra.mxu0 %v485
        %513 = vmatprep.subr.bf16.mxu0 %v484
        %514 = vmatpush1.bf16.msra.mxu0 %v483
        %515 = vmatprep.subr.bf16.mxu0 %v482
        %516 = vmatpush1.bf16.msra.mxu0 %v481
        %517 = vmatprep.subr.bf16.mxu0 %v480
        %518 = vmatpush1.bf16.msra.mxu0 %v479
        %519 = vmatprep.subr.bf16.mxu0 %v478
        %520 = vmatpush1.bf16.msra.mxu0 %v477
        %521 = vmatprep.subr.bf16.mxu0 %v476
        %522 = vmatpush1.bf16.msra.mxu0 %v475
        %523 = vmatprep.subr.bf16.mxu0 0
        %524 = vmatpush2.bf16.msra.mxu0 0
        %525 = vmatprep.subr.bf16.mxu0 0
        %526 = vmatpush2.bf16.msra.mxu0 0
        %527 = vmatprep.subr.bf16.mxu0 0
        %528 = vmatpush2.bf16.msra.mxu0 0
        %529 = vmatprep.subr.bf16.mxu0 0
        %530 = vmatpush2.bf16.msra.mxu0 0
        %531 = vmatprep.subr.bf16.mxu0 0
        %532 = vmatpush2.bf16.msra.mxu0 0
        %533 = vmatprep.subr.bf16.mxu0 0
        %534 = vmatpush2.bf16.msra.mxu0 0
        %535 = vmatprep.subr.bf16.mxu0 0
        %536 = vmatpush2.bf16.msra.mxu0 0
        %537 = vmatprep.subr.bf16.mxu0 0
        %538 = vmatpush2.bf16.msra.mxu0 0
        %539 = vmatprep.mubr.bf16.mxu0 0
        %540 = vmatmul.mubr.bf16.gmra.mxu0 %v391
        %v541 = vpop.f32.mrf.mxu0
        %v542 = vadd.f32 %v420, %v541
        %v543 = vpop.f32.mrf.mxu0
        %v544 = vadd.f32 %v424, %v543
        %v545 = vpop.f32.mrf.mxu0
        %v546 = vadd.f32 %v420, %v545
        %v547 = vpop.f32.mrf.mxu0
        %v548 = vadd.f32 %v424, %v547
        %549 = vmatprep.mubr.bf16.mxu0 0
        %550 = vmatmul.mubr.bf16.gmra.mxu0 %v392
        %v551 = vpop.f32.mrf.mxu0
        %v552 = vadd.f32 %v420, %v551
        %v553 = vpop.f32.mrf.mxu0
        %v554 = vadd.f32 %v424, %v553
        %v555 = vpop.f32.mrf.mxu0
        %v556 = vadd.f32 %v420, %v555
        %v557 = vpop.f32.mrf.mxu0
        %v558 = vadd.f32 %v424, %v557
        %559 = vmatprep.mubr.bf16.mxu0 0
        %560 = vmatmul.mubr.bf16.gmra.mxu0 %v393
        %v561 = vpop.f32.mrf.mxu0
        %v562 = vadd.f32 %v420, %v561
        %v563 = vpop.f32.mrf.mxu0
        %v564 = vadd.f32 %v424, %v563
        %v565 = vpop.f32.mrf.mxu0
        %v566 = vadd.f32 %v420, %v565
        %v567 = vpop.f32.mrf.mxu0
        %v568 = vadd.f32 %v424, %v567
        %569 = vmatprep.mubr.bf16.mxu0 0
        %570 = vmatmul.mubr.bf16.gmra.mxu0 %v394
        %v571 = vpop.f32.mrf.mxu0
        %v572 = vadd.f32 %v420, %v571
        %v573 = vpop.f32.mrf.mxu0
        %v574 = vadd.f32 %v424, %v573
        %v575 = vpop.f32.mrf.mxu0
        %v576 = vadd.f32 %v420, %v575
        %v577 = vpop.f32.mrf.mxu0
        %v578 = vadd.f32 %v424, %v577
        %579 = vmatprep.mubr.bf16.mxu0 0
        %580 = vmatmul.mubr.bf16.gmra.mxu0 %v395
        %v581 = vpop.f32.mrf.mxu0
        %v582 = vadd.f32 %v420, %v581
        %v583 = vpop.f32.mrf.mxu0
        %v584 = vadd.f32 %v424, %v583
        %v585 = vpop.f32.mrf.mxu0
        %v586 = vadd.f32 %v420, %v585
        %v587 = vpop.f32.mrf.mxu0
        %v588 = vadd.f32 %v424, %v587
        %589 = vmatprep.mubr.bf16.mxu0 0
        %590 = vmatmul.mubr.bf16.gmra.mxu0 %v396
        %v591 = vpop.f32.mrf.mxu0
        %v592 = vadd.f32 %v420, %v591
        %v593 = vpop.f32.mrf.mxu0
        %v594 = vadd.f32 %v424, %v593
        %v595 = vpop.f32.mrf.mxu0
        %v596 = vadd.f32 %v420, %v595
        %v597 = vpop.f32.mrf.mxu0
        %v598 = vadd.f32 %v424, %v597
        %599 = vmatprep.mubr.bf16.mxu0 0
        %600 = vmatmul.mubr.bf16.gmra.mxu0 %v397
        %v601 = vpop.f32.mrf.mxu0
        %v602 = vadd.f32 %v420, %v601
        %v603 = vpop.f32.mrf.mxu0
        %v604 = vadd.f32 %v424, %v603
        %v605 = vpop.f32.mrf.mxu0
        %v606 = vadd.f32 %v420, %v605
        %v607 = vpop.f32.mrf.mxu0
        %v608 = vadd.f32 %v424, %v607
        %609 = vmatprep.mubr.bf16.mxu0 0
        %610 = vmatmul.mubr.bf16.gmra.mxu0 %v398
        %v611 = vpop.f32.mrf.mxu0
        %v612 = vadd.f32 %v420, %v611
        %v613 = vpop.f32.mrf.mxu0
        %v614 = vadd.f32 %v424, %v613
        %v615 = vpop.f32.mrf.mxu0
        %v616 = vadd.f32 %v420, %v615
        %v617 = vpop.f32.mrf.mxu0
        %v618 = vadd.f32 %v424, %v617
        %619 = vdwg.mxu0
        // Predicated region
        $region64: #{tpu_custom_call.1} parent=31 // pred_check
          %p620 = pneg %p252
        $region65: #{tpu_custom_call.1} parent=31 // pred_check_branch
          %622 = sbr.rel (%p620) target = $region67
        $region66: #{tpu_custom_call.1} parent=31 // pred_region
          %v623 = vmax.f32 %v542, %v544
          %624 = vmax.xlane.f32.xlu0 %v623
          %v625 = vpop.xlane.xlu0 %624
          %v626 = vmax.f32 %v546, %v548
          %627 = vmax.xlane.f32.xlu0 %v626
          %v628 = vpop.xlane.xlu0 %627
          %v629 = vmax.f32 %v552, %v554
          %630 = vmax.xlane.f32.xlu0 %v629
          %v631 = vpop.xlane.xlu0 %630
          %v632 = vmax.f32 %v556, %v558
          %633 = vmax.xlane.f32.xlu0 %v632
          %v634 = vpop.xlane.xlu0 %633
          %v635 = vmax.f32 %v562, %v564
          %636 = vmax.xlane.f32.xlu0 %v635
          %v637 = vpop.xlane.xlu0 %636
          %v638 = vmax.f32 %v566, %v568
          %639 = vmax.xlane.f32.xlu0 %v638
          %v640 = vpop.xlane.xlu0 %639
          %v641 = vmax.f32 %v572, %v574
          %642 = vmax.xlane.f32.xlu0 %v641
          %v643 = vpop.xlane.xlu0 %642
          %v644 = vmax.f32 %v576, %v578
          %645 = vmax.xlane.f32.xlu0 %v644
          %v646 = vpop.xlane.xlu0 %645
          %v647 = vmax.f32 %v582, %v584
          %648 = vmax.xlane.f32.xlu0 %v647
          %v649 = vpop.xlane.xlu0 %648
          %v650 = vmax.f32 %v586, %v588
          %651 = vmax.xlane.f32.xlu0 %v650
          %v652 = vpop.xlane.xlu0 %651
          %v653 = vmax.f32 %v592, %v594
          %654 = vmax.xlane.f32.xlu0 %v653
          %v655 = vpop.xlane.xlu0 %654
          %v656 = vmax.f32 %v596, %v598
          %657 = vmax.xlane.f32.xlu0 %v656
          %v658 = vpop.xlane.xlu0 %657
          %v659 = vmax.f32 %v602, %v604
          %660 = vmax.xlane.f32.xlu0 %v659
          %v661 = vpop.xlane.xlu0 %660
          %v662 = vmax.f32 %v606, %v608
          %663 = vmax.xlane.f32.xlu0 %v662
          %v664 = vpop.xlane.xlu0 %663
          %v665 = vmax.f32 %v612, %v614
          %666 = vmax.xlane.f32.xlu0 %v665
          %v667 = vpop.xlane.xlu0 %666
          %v668 = vmax.f32 %v616, %v618
          %669 = vmax.xlane.f32.xlu0 %v668
          %v670 = vpop.xlane.xlu0 %669
          %v671 = vmax.f32 %v625, %v637
          %v672 = vmax.f32 %v628, %v640
          %v673 = vmax.f32 %v631, %v643
          %v674 = vmax.f32 %v634, %v646
          %v675 = vmax.f32 %v671, %v649
          %v676 = vmax.f32 %v672, %v652
          %v677 = vmax.f32 %v673, %v655
          %v678 = vmax.f32 %v674, %v658
          %v679 = vmax.f32 %v675, %v661
          %v680 = vmax.f32 %v676, %v664
          %v681 = vmax.f32 %v677, %v667
          %v682 = vmax.f32 %v678, %v670
          %v683 = vmax.f32 %v679, %v680
          %v684 = vmax.f32 %v681, %v682
          %v685 = vmax.f32 %v683, %v684
          %v686 = vrot.slane %v685, 4
          %v687 = vmax.f32 %v685, %v686
          %v688 = vrot.slane %v687, 2
          %v689 = vmax.f32 %v687, %v688
          %v690 = vrot.slane %v689, 1
          %v691 = vmax.f32 %v689, %v690
          %v692 = vld [vmem:[#allocation3] sm:$0x1]
          %v693 = vmax.f32 %v692, %v691
          %v695 = vlaneseq
          %v696 = vshrl.u32 %v695, 7
          %v697 = vsub.s32 0, %v696
          %v698 = vrot.slane %v693, %v697
          %699 = vset.pattern.permute.xlu0 0
          %700 = vperm.xlu0 %699, %v698
          %v701 = vpop.permute.xlu0 %700
          %v703 = vsub.f32 %v542, %v701
          %v704 = vsub.f32 %v544, %v701
          %v705 = vsub.f32 %v546, %v701
          %v706 = vsub.f32 %v548, %v701
          %v707 = vsub.f32 %v552, %v701
          %v708 = vsub.f32 %v554, %v701
          %v709 = vsub.f32 %v556, %v701
          %v710 = vsub.f32 %v558, %v701
          %v711 = vsub.f32 %v562, %v701
          %v712 = vsub.f32 %v564, %v701
          %v713 = vsub.f32 %v566, %v701
          %v714 = vsub.f32 %v568, %v701
          %v715 = vsub.f32 %v572, %v701
          %v716 = vsub.f32 %v574, %v701
          %v717 = vsub.f32 %v576, %v701
          %v718 = vsub.f32 %v578, %v701
          %v719 = vsub.f32 %v582, %v701
          %v720 = vsub.f32 %v584, %v701
          %v721 = vsub.f32 %v586, %v701
          %v722 = vsub.f32 %v588, %v701
          %v723 = vsub.f32 %v592, %v701
          %v724 = vsub.f32 %v594, %v701
          %v725 = vsub.f32 %v596, %v701
          %v726 = vsub.f32 %v598, %v701
          %v727 = vsub.f32 %v602, %v701
          %v728 = vsub.f32 %v604, %v701
          %v729 = vsub.f32 %v606, %v701
          %v730 = vsub.f32 %v608, %v701
          %v731 = vsub.f32 %v612, %v701
          %v732 = vsub.f32 %v614, %v701
          %v733 = vsub.f32 %v616, %v701
          %v734 = vsub.f32 %v618, %v701
          %v735 = vmul.f32 %v703, 1.442695
          %v736 = vpow.pop %v735
          %v737 = vmul.f32 %v704, 1.442695
          %v738 = vpow.pop %v737
          %v739 = vmul.f32 %v705, 1.442695
          %v740 = vpow.pop %v739
          %v741 = vmul.f32 %v706, 1.442695
          %v742 = vpow.pop %v741
          %v743 = vmul.f32 %v707, 1.442695
          %v744 = vpow.pop %v743
          %v745 = vmul.f32 %v708, 1.442695
          %v746 = vpow.pop %v745
          %v747 = vmul.f32 %v709, 1.442695
          %v748 = vpow.pop %v747
          %v749 = vmul.f32 %v710, 1.442695
          %v750 = vpow.pop %v749
          %v751 = vmul.f32 %v711, 1.442695
          %v752 = vpow.pop %v751
          %v753 = vmul.f32 %v712, 1.442695
          %v754 = vpow.pop %v753
          %v755 = vmul.f32 %v713, 1.442695
          %v756 = vpow.pop %v755
          %v757 = vmul.f32 %v714, 1.442695
          %v758 = vpow.pop %v757
          %v759 = vmul.f32 %v715, 1.442695
          %v760 = vpow.pop %v759
          %v761 = vmul.f32 %v716, 1.442695
          %v762 = vpow.pop %v761
          %v763 = vmul.f32 %v717, 1.442695
          %v764 = vpow.pop %v763
          %v765 = vmul.f32 %v718, 1.442695
          %v766 = vpow.pop %v765
          %v767 = vmul.f32 %v719, 1.442695
          %v768 = vpow.pop %v767
          %v769 = vmul.f32 %v720, 1.442695
          %v770 = vpow.pop %v769
          %v771 = vmul.f32 %v721, 1.442695
          %v772 = vpow.pop %v771
          %v773 = vmul.f32 %v722, 1.442695
          %v774 = vpow.pop %v773
          %v775 = vmul.f32 %v723, 1.442695
          %v776 = vpow.pop %v775
          %v777 = vmul.f32 %v724, 1.442695
          %v778 = vpow.pop %v777
          %v779 = vmul.f32 %v725, 1.442695
          %v780 = vpow.pop %v779
          %v781 = vmul.f32 %v726, 1.442695
          %v782 = vpow.pop %v781
          %v783 = vmul.f32 %v727, 1.442695
          %v784 = vpow.pop %v783
          %v785 = vmul.f32 %v728, 1.442695
          %v786 = vpow.pop %v785
          %v787 = vmul.f32 %v729, 1.442695
          %v788 = vpow.pop %v787
          %v789 = vmul.f32 %v730, 1.442695
          %v790 = vpow.pop %v789
          %v791 = vmul.f32 %v731, 1.442695
          %v792 = vpow.pop %v791
          %v793 = vmul.f32 %v732, 1.442695
          %v794 = vpow.pop %v793
          %v795 = vmul.f32 %v733, 1.442695
          %v796 = vpow.pop %v795
          %v797 = vmul.f32 %v734, 1.442695
          %v798 = vpow.pop %v797
          %v799 = vadd.f32 %v736, %v738
          %800 = vadd.xlane.f32.xlu0 %v799
          %v801 = vpop.xlane.xlu0 %800
          %v802 = vadd.f32 %v740, %v742
          %803 = vadd.xlane.f32.xlu0 %v802
          %v804 = vpop.xlane.xlu0 %803
          %v805 = vadd.f32 %v744, %v746
          %806 = vadd.xlane.f32.xlu0 %v805
          %v807 = vpop.xlane.xlu0 %806
          %v808 = vadd.f32 %v748, %v750
          %809 = vadd.xlane.f32.xlu0 %v808
          %v810 = vpop.xlane.xlu0 %809
          %v811 = vadd.f32 %v752, %v754
          %812 = vadd.xlane.f32.xlu0 %v811
          %v813 = vpop.xlane.xlu0 %812
          %v814 = vadd.f32 %v756, %v758
          %815 = vadd.xlane.f32.xlu0 %v814
          %v816 = vpop.xlane.xlu0 %815
          %v817 = vadd.f32 %v760, %v762
          %818 = vadd.xlane.f32.xlu0 %v817
          %v819 = vpop.xlane.xlu0 %818
          %v820 = vadd.f32 %v764, %v766
          %821 = vadd.xlane.f32.xlu0 %v820
          %v822 = vpop.xlane.xlu0 %821
          %v823 = vadd.f32 %v768, %v770
          %824 = vadd.xlane.f32.xlu0 %v823
          %v825 = vpop.xlane.xlu0 %824
          %v826 = vadd.f32 %v772, %v774
          %827 = vadd.xlane.f32.xlu0 %v826
          %v828 = vpop.xlane.xlu0 %827
          %v829 = vadd.f32 %v776, %v778
          %830 = vadd.xlane.f32.xlu0 %v829
          %v831 = vpop.xlane.xlu0 %830
          %v832 = vadd.f32 %v780, %v782
          %833 = vadd.xlane.f32.xlu0 %v832
          %v834 = vpop.xlane.xlu0 %833
          %v835 = vadd.f32 %v784, %v786
          %836 = vadd.xlane.f32.xlu0 %v835
          %v837 = vpop.xlane.xlu0 %836
          %v838 = vadd.f32 %v788, %v790
          %839 = vadd.xlane.f32.xlu0 %v838
          %v840 = vpop.xlane.xlu0 %839
          %v841 = vadd.f32 %v792, %v794
          %842 = vadd.xlane.f32.xlu0 %v841
          %v843 = vpop.xlane.xlu0 %842
          %v844 = vadd.f32 %v796, %v798
          %845 = vadd.xlane.f32.xlu0 %v844
          %v846 = vpop.xlane.xlu0 %845
          %v847 = vadd.f32 %v801, %v804
          %v848 = vadd.f32 %v847, %v807
          %v849 = vadd.f32 %v848, %v810
          %v850 = vadd.f32 %v849, %v813
          %v851 = vadd.f32 %v850, %v816
          %v852 = vadd.f32 %v851, %v819
          %v853 = vadd.f32 %v852, %v822
          %v854 = vadd.f32 %v853, %v825
          %v855 = vadd.f32 %v854, %v828
          %v856 = vadd.f32 %v855, %v831
          %v857 = vadd.f32 %v856, %v834
          %v858 = vadd.f32 %v857, %v837
          %v859 = vadd.f32 %v858, %v840
          %v860 = vadd.f32 %v859, %v843
          %v861 = vadd.f32 %v860, %v846
          %v862 = vrot.slane %v861, 4
          %v863 = vadd.f32 %v861, %v862
          %v864 = vrot.slane %v863, 2
          %v865 = vadd.f32 %v863, %v864
          %v866 = vrot.slane %v865, 1
          %v867 = vadd.f32 %v865, %v866
          %v868 = vld [vmem:[#allocation4] sm:$0x1]
          %v869 = vsub.f32 %v692, %v693
          %v870 = vmul.f32 %v869, 1.442695
          %v871 = vpow.pop %v870
          %v872 = vmul.f32 %v868, %v871
          %v873 = vadd.f32 %v872, %v867
          %vm874 = vcmask 0
          %875 = vst.msk [vmem:[#allocation4] sm:$0x1] %vm874, %v873
          %876 = vst.msk [vmem:[#allocation3] sm:$0x1] %vm874, %v693
        $region67: #{tpu_custom_call.1} parent=31 // pred_fallthru
          _
        %p877 = scmp.eq.s32.totalorder %s33, 1
        // Predicated region
        $region68: #{tpu_custom_call.1} parent=31 // pred_check
          %p878 = pneg %p877
        $region69: #{tpu_custom_call.1} parent=31 // pred_check_branch
          %880 = sbr.rel (%p878) target = $region71
        $region70: #{tpu_custom_call.1} parent=31 // pred_region
          %v881 = vld [vmem:[#allocation3] sm:$0x1]
          %v883 = vlaneseq
          %v884 = vshrl.u32 %v883, 7
          %v885 = vsub.s32 0, %v884
          %v886 = vrot.slane %v881, %v885
          %887 = vset.pattern.permute.xlu0 0
          %888 = vperm.xlu0 %887, %v886
          %v889 = vpop.permute.xlu0 %888
          %v891 = vsub.f32 %v542, %v889
          %v892 = vsub.f32 %v544, %v889
          %v893 = vsub.f32 %v546, %v889
          %v894 = vsub.f32 %v548, %v889
          %v895 = vsub.f32 %v552, %v889
          %v896 = vsub.f32 %v554, %v889
          %v897 = vsub.f32 %v556, %v889
          %v898 = vsub.f32 %v558, %v889
          %v899 = vsub.f32 %v562, %v889
          %v900 = vsub.f32 %v564, %v889
          %v901 = vsub.f32 %v566, %v889
          %v902 = vsub.f32 %v568, %v889
          %v903 = vsub.f32 %v572, %v889
          %v904 = vsub.f32 %v574, %v889
          %v905 = vsub.f32 %v576, %v889
          %v906 = vsub.f32 %v578, %v889
          %v907 = vsub.f32 %v582, %v889
          %v908 = vsub.f32 %v584, %v889
          %v909 = vsub.f32 %v586, %v889
          %v910 = vsub.f32 %v588, %v889
          %v911 = vsub.f32 %v592, %v889
          %v912 = vsub.f32 %v594, %v889
          %v913 = vsub.f32 %v596, %v889
          %v914 = vsub.f32 %v598, %v889
          %v915 = vsub.f32 %v602, %v889
          %v916 = vsub.f32 %v604, %v889
          %v917 = vsub.f32 %v606, %v889
          %v918 = vsub.f32 %v608, %v889
          %v919 = vsub.f32 %v612, %v889
          %v920 = vsub.f32 %v614, %v889
          %v921 = vsub.f32 %v616, %v889
          %v922 = vsub.f32 %v618, %v889
          %v923 = vmul.f32 %v891, 1.442695
          %v924 = vpow.pop %v923
          %v925 = vmul.f32 %v892, 1.442695
          %v926 = vpow.pop %v925
          %v927 = vmul.f32 %v893, 1.442695
          %v928 = vpow.pop %v927
          %v929 = vmul.f32 %v894, 1.442695
          %v930 = vpow.pop %v929
          %v931 = vmul.f32 %v895, 1.442695
          %v932 = vpow.pop %v931
          %v933 = vmul.f32 %v896, 1.442695
          %v934 = vpow.pop %v933
          %v935 = vmul.f32 %v897, 1.442695
          %v936 = vpow.pop %v935
          %v937 = vmul.f32 %v898, 1.442695
          %v938 = vpow.pop %v937
          %v939 = vmul.f32 %v899, 1.442695
          %v940 = vpow.pop %v939
          %v941 = vmul.f32 %v900, 1.442695
          %v942 = vpow.pop %v941
          %v943 = vmul.f32 %v901, 1.442695
          %v944 = vpow.pop %v943
          %v945 = vmul.f32 %v902, 1.442695
          %v946 = vpow.pop %v945
          %v947 = vmul.f32 %v903, 1.442695
          %v948 = vpow.pop %v947
          %v949 = vmul.f32 %v904, 1.442695
          %v950 = vpow.pop %v949
          %v951 = vmul.f32 %v905, 1.442695
          %v952 = vpow.pop %v951
          %v953 = vmul.f32 %v906, 1.442695
          %v954 = vpow.pop %v953
          %v955 = vmul.f32 %v907, 1.442695
          %v956 = vpow.pop %v955
          %v957 = vmul.f32 %v908, 1.442695
          %v958 = vpow.pop %v957
          %v959 = vmul.f32 %v909, 1.442695
          %v960 = vpow.pop %v959
          %v961 = vmul.f32 %v910, 1.442695
          %v962 = vpow.pop %v961
          %v963 = vmul.f32 %v911, 1.442695
          %v964 = vpow.pop %v963
          %v965 = vmul.f32 %v912, 1.442695
          %v966 = vpow.pop %v965
          %v967 = vmul.f32 %v913, 1.442695
          %v968 = vpow.pop %v967
          %v969 = vmul.f32 %v914, 1.442695
          %v970 = vpow.pop %v969
          %v971 = vmul.f32 %v915, 1.442695
          %v972 = vpow.pop %v971
          %v973 = vmul.f32 %v916, 1.442695
          %v974 = vpow.pop %v973
          %v975 = vmul.f32 %v917, 1.442695
          %v976 = vpow.pop %v975
          %v977 = vmul.f32 %v918, 1.442695
          %v978 = vpow.pop %v977
          %v979 = vmul.f32 %v919, 1.442695
          %v980 = vpow.pop %v979
          %v981 = vmul.f32 %v920, 1.442695
          %v982 = vpow.pop %v981
          %v983 = vmul.f32 %v921, 1.442695
          %v984 = vpow.pop %v983
          %v985 = vmul.f32 %v922, 1.442695
          %v986 = vpow.pop %v985
          %v987 = vld [vmem:[#allocation4] sm:$0x1]
          %v989 = vlaneseq
          %v990 = vshrl.u32 %v989, 7
          %v991 = vsub.s32 0, %v990
          %v992 = vrot.slane %v987, %v991
          %993 = vset.pattern.permute.xlu0 0
          %994 = vperm.xlu0 %993, %v992
          %v995 = vpop.permute.xlu0 %994
          %v997 = vrcp.pop %v995
          %v998 = vmul.f32 %v924, %v997
          %v999 = vmul.f32 %v926, %v997
          %v1000 = vmul.f32 %v928, %v997
          %v1001 = vmul.f32 %v930, %v997
          %v1002 = vmul.f32 %v932, %v997
          %v1003 = vmul.f32 %v934, %v997
          %v1004 = vmul.f32 %v936, %v997
          %v1005 = vmul.f32 %v938, %v997
          %v1006 = vmul.f32 %v940, %v997
          %v1007 = vmul.f32 %v942, %v997
          %v1008 = vmul.f32 %v944, %v997
          %v1009 = vmul.f32 %v946, %v997
          %v1010 = vmul.f32 %v948, %v997
          %v1011 = vmul.f32 %v950, %v997
          %v1012 = vmul.f32 %v952, %v997
          %v1013 = vmul.f32 %v954, %v997
          %v1014 = vmul.f32 %v956, %v997
          %v1015 = vmul.f32 %v958, %v997
          %v1016 = vmul.f32 %v960, %v997
          %v1017 = vmul.f32 %v962, %v997
          %v1018 = vmul.f32 %v964, %v997
          %v1019 = vmul.f32 %v966, %v997
          %v1020 = vmul.f32 %v968, %v997
          %v1021 = vmul.f32 %v970, %v997
          %v1022 = vmul.f32 %v972, %v997
          %v1023 = vmul.f32 %v974, %v997
          %v1024 = vmul.f32 %v976, %v997
          %v1025 = vmul.f32 %v978, %v997
          %v1026 = vmul.f32 %v980, %v997
          %v1027 = vmul.f32 %v982, %v997
          %v1028 = vmul.f32 %v984, %v997
          %v1029 = vmul.f32 %v986, %v997
          %1030 = vst [vmem:[%s246] sm:$0xff] %v998
          %1031 = vst [vmem:[%s246 + $0x8] sm:$0xff] %v999
          %1032 = vst [vmem:[%s246 + $0x10] sm:$0xff] %v1000
          %1033 = vst [vmem:[%s246 + $0x18] sm:$0xff] %v1001
          %1034 = vst [vmem:[%s246 + $0x20] sm:$0xff] %v1002
          %1035 = vst [vmem:[%s246 + $0x28] sm:$0xff] %v1003
          %1036 = vst [vmem:[%s246 + $0x30] sm:$0xff] %v1004
          %1037 = vst [vmem:[%s246 + $0x38] sm:$0xff] %v1005
          %1038 = vst [vmem:[%s246 + $0x40] sm:$0xff] %v1006
          %1039 = vst [vmem:[%s246 + $0x48] sm:$0xff] %v1007
          %1040 = vst [vmem:[%s246 + $0x50] sm:$0xff] %v1008
          %1041 = vst [vmem:[%s246 + $0x58] sm:$0xff] %v1009
          %1042 = vst [vmem:[%s246 + $0x60] sm:$0xff] %v1010
          %1043 = vst [vmem:[%s246 + $0x68] sm:$0xff] %v1011
          %1044 = vst [vmem:[%s246 + $0x70] sm:$0xff] %v1012
          %1045 = vst [vmem:[%s246 + $0x78] sm:$0xff] %v1013
          %1046 = vst [vmem:[%s246 + $0x80] sm:$0xff] %v1014
          %1047 = vst [vmem:[%s246 + $0x88] sm:$0xff] %v1015
          %1048 = vst [vmem:[%s246 + $0x90] sm:$0xff] %v1016
          %1049 = vst [vmem:[%s246 + $0x98] sm:$0xff] %v1017
          %1050 = vst [vmem:[%s246 + $0xa0] sm:$0xff] %v1018
          %1051 = vst [vmem:[%s246 + $0xa8] sm:$0xff] %v1019
          %1052 = vst [vmem:[%s246 + $0xb0] sm:$0xff] %v1020
          %1053 = vst [vmem:[%s246 + $0xb8] sm:$0xff] %v1021
          %1054 = vst [vmem:[%s246 + $0xc0] sm:$0xff] %v1022
          %1055 = vst [vmem:[%s246 + $0xc8] sm:$0xff] %v1023
          %1056 = vst [vmem:[%s246 + $0xd0] sm:$0xff] %v1024
          %1057 = vst [vmem:[%s246 + $0xd8] sm:$0xff] %v1025
          %1058 = vst [vmem:[%s246 + $0xe0] sm:$0xff] %v1026
          %1059 = vst [vmem:[%s246 + $0xe8] sm:$0xff] %v1027
          %1060 = vst [vmem:[%s246 + $0xf0] sm:$0xff] %v1028
          %1061 = vst [vmem:[%s246 + $0xf8] sm:$0xff] %v1029
        $region71: #{tpu_custom_call.1} parent=31 // pred_fallthru
          _
        %s1062 = sand.u32 %s124, 1
        %s1063 = scalar_lea.sflag [#allocation10], %s1062
        %s1064 = sand.u32 %s124, 1
        %s1065 = smul.addr %s1064, 256
        %s1066 = scalar_lea.vmem [#allocation13], %s1065
        // Predicated region
        $region72: #{tpu_custom_call.1} parent=31 // pred_check
          %p1067 = pneg %p134
        $region73: #{tpu_custom_call.1} parent=31 // pred_check_branch
          %1069 = sbr.rel (%p1067) target = $region75
        $region74: #{tpu_custom_call.1} parent=31 // pred_region
          %s1070 = smul.u32 %s34, %s33
          %s1071 = smul.u32 2, %s1070
          %s1073 = ssub.s32 4096, 4096
          %1074 = vsyncadd %s1063, %s1073
          %s1075 = smul.addr %s1071, 128
          %s1076 = scalar_lea.hbm %s5, %s1075
          %s1077 = sshll.u32 %s1066, 4
          %s1078 = int_to_ptr.vmem [resolvable:$true] %s1077
          %1083 = dma.vmem_to_hbm [thread:$0]  %s1078, 4096, %s1076, %s1063, 256, 1024, 16
        $region75: #{tpu_custom_call.1} parent=31 // pred_fallthru
          _
      $region32: #{tpu_custom_call.1} parent=5 // pred_fallthru
        _
      %p1084 = scmp.le.s32.totalorder 2, %s24
      // Predicated region
      $region76: #{tpu_custom_call.1} parent=5 // pred_check
        %p1085 = pneg %p1084
      $region77: #{tpu_custom_call.1} parent=5 // pred_check_branch
        %1087 = sbr.rel (%p1085) target = $region79
      $region78: #{tpu_custom_call.1} parent=5 // pred_region
        %s1088 = ssub.s32 %s24, 2
        // Predicated region
        $region80: #{tpu_custom_call.1} parent=78 // pred_check
          %p1089 = pneg %p140
        $region81: #{tpu_custom_call.1} parent=78 // pred_check_branch
          %1091 = sbr.rel (%p1089) target = $region83
        $region82: #{tpu_custom_call.1} parent=78 // pred_region
          %s1092 = sand.u32 %s125, 1
          %s1093 = scalar_lea.sflag [#allocation10], %s1092
          %s1094 = sand.u32 %s125, 1
          %s1095 = smul.addr %s1094, 256
          %s1096 = scalar_lea.vmem [#allocation13], %s1095
          %1097 = dma.done %s1093, 4096
        $region83: #{tpu_custom_call.1} parent=78 // pred_fallthru
          _
      $region79: #{tpu_custom_call.1} parent=5 // pred_fallthru
        _
    $region6: #{tpu_custom_call.1} parent=1 // loop_footer
      %s28 = sadd.s32 1, %s24
    $region7: #{tpu_custom_call.1} parent=1 // loop_footer_branch
      %23 = sbr.rel target = $region3
    $region8: #{tpu_custom_call.1} parent=1 // loop_exit
      _
    %1098 = vsyncpa [#allocation9], 1
    %s1099 = scalar_lea.sflag [#allocation9], 1
    %1100 = vsyncpa %s1099, 1
    %1101 = vsyncpa [#allocation12], 1
    %s1102 = scalar_lea.sflag [#allocation12], 1
    %1103 = vsyncpa %s1102, 1
    %1104 = vsyncpa [#allocation10], 1
    %s1105 = scalar_lea.sflag [#allocation10], 1
    %1106 = vsyncpa %s1105, 1
  %1107 = vsyncmov [#allocation5]
  %s1108 = vpop.sfrf %1107
  %p1109 = scmp.eq.s32.totalorder %s1108, 0
  %p1110 = pneg %p1109
  %1112 = shalt.err (%p1110)
  %s1113 = scalar_lea.sflag [#allocation5], 1
  %1114 = vsyncmov %s1113
  %s1115 = vpop.sfrf %1114
  %p1116 = scmp.eq.s32.totalorder %s1115, 0
  %p1117 = pneg %p1116
  %1119 = shalt.err (%p1117)

</llo_original>
